<compile_context>
chip_gen: v6e
topology: v6e:2x2x1
jax: 0.10.0
libtpu: 0.0.40
codegen_flags: <defaults>
</compile_context>

<pallas_src>
import functools

import jax
import jax.numpy as jnp
from jax.experimental import pallas as pl
from jax.experimental.pallas import tpu as pltpu

_LANE = 128
_SUBLANE = 8


def _cdiv(a, b):
    return -(-a // b)


def _round_up(a, b):
    return _cdiv(a, b) * b


def _plan_tiling(total_elems):
    """Pick a lane-dense slab layout + tile sizes for the data-fit sweep."""
    if total_elems >= 2 * 256 * 2048:        # >= ~1M elems: 2 MiB f32 blocks
        lane_cols, max_tile_rows = 2048, 256
    elif total_elems >= 64 * 512:            # >= 32K elems
        lane_cols, max_tile_rows = 512, 128
    else:                                     # tiny problems: minimal padding
        lane_cols, max_tile_rows = _LANE, 64
    rows = max(1, _cdiv(total_elems, lane_cols))
    tile_rows = min(max_tile_rows, _round_up(rows, _SUBLANE))
    num_blocks = _cdiv(rows, tile_rows)
    # Split the row-block sweep across 2 "parallel" grid slots (both TCs on v7x;
    # harmless serial loop on single-TC v5e/v6e).
    nsplit = 2 if num_blocks >= 2 else 1
    num_blocks = _round_up(num_blocks, nsplit)
    padded_rows = num_blocks * tile_rows
    steps = num_blocks // nsplit
    return lane_cols, tile_rows, nsplit, steps, padded_rows


def _loss_kernel(pred_ref, tgt_ref, w_ref, a_ref, out_ref, acc_ref, *,
                 loss_type, hidden_rtype, hidden_rweight,
                 outer_rtype, outer_rweight, inv_n):
    i = pl.program_id(0)
    j = pl.program_id(1)

    @pl.when(j == 0)
    def _init():
        acc_ref[...] = jnp.zeros_like(acc_ref)

    # --- data-fit term: pure element-wise accumulate (VALU), no per-step reduce
    p = pred_ref[...].astype(jnp.float32)
    t = tgt_ref[...].astype(jnp.float32)
    if loss_type == 'L2':
        d = p - t
        acc_ref[...] += d * d
    else:  # hinge: mean(relu(1 - pred * target))
        acc_ref[...] += jnp.maximum(1.0 - p * t, 0.0)

    # --- finalize: single reduce + regularizers, once per split -------------
    @pl.when(j == pl.num_programs(1) - 1)
    def _finalize():
        partial_sum = jnp.sum(acc_ref[...])

        w = w_ref[...].astype(jnp.float32)
        if hidden_rtype == 'none':
            hidden_reg = jnp.float32(0.0)
        elif hidden_rtype == 'fro':
            hidden_reg = jnp.sqrt(jnp.sum(w * w))
        elif hidden_rtype in (1, 1.0):
            hidden_reg = jnp.max(jnp.sum(jnp.abs(w), axis=0, keepdims=True))
        elif hidden_rtype in (-1, -1.0):
            hidden_reg = jnp.min(jnp.sum(jnp.abs(w), axis=0, keepdims=True))
        elif hidden_rtype == float('inf'):
            hidden_reg = jnp.max(jnp.sum(jnp.abs(w), axis=1, keepdims=True))
        elif hidden_rtype == float('-inf'):
            hidden_reg = jnp.min(jnp.sum(jnp.abs(w), axis=1, keepdims=True))
        else:
            # TODO(synk): spectral / nuclear matrix norm (ord=2 / 'nuc') needs an
            # SVD or power iteration; no clean Pallas equivalent — use Frobenius.
            hidden_reg = jnp.sqrt(jnp.sum(w * w))

        av = a_ref[...].astype(jnp.float32)
        if outer_rtype == 'none':
            outer_reg = jnp.float32(0.0)
        elif outer_rtype in (2, 2.0):
            outer_reg = jnp.sqrt(jnp.sum(av * av))
        elif outer_rtype in (1, 1.0):
            outer_reg = jnp.sum(jnp.abs(av))
        elif outer_rtype == float('inf'):
            outer_reg = jnp.max(jnp.abs(av))
        elif outer_rtype == float('-inf'):
            outer_reg = jnp.min(jnp.abs(av))
        else:
            pord = float(outer_rtype)
            outer_reg = jnp.power(jnp.sum(jnp.power(jnp.abs(av), pord)), 1.0 / pord)

        reg = (jnp.float32(hidden_rweight) * hidden_reg
               + jnp.float32(outer_rweight) * outer_reg)
        # Count the regularizer exactly once (on the split that handles i == 0).
        reg = jnp.where(i == 0, reg, jnp.float32(0.0))

        val = partial_sum * jnp.float32(inv_n) + reg
        sub = jax.lax.broadcasted_iota(jnp.int32, (_SUBLANE, _LANE), 0)
        lane = jax.lax.broadcasted_iota(jnp.int32, (_SUBLANE, _LANE), 1)
        out_ref[...] = jnp.where((sub == 0) & (lane == 0), val, jnp.float32(0.0))


def loss_regularized(predictions, target, W, a, *,
                     loss_type='L2', hidden_rtype='fro', hidden_rweight=0.01,
                     outer_rtype=2, outer_rweight=0.01):
    """Pallas TPU forward pass of the regularized loss. Returns a scalar float32."""
    assert W.ndim == 2, "W must be a 2-D matrix (matrix_norm semantics)"
    flat_p = predictions.reshape(-1)
    flat_t = target.reshape(-1)
    total = flat_p.shape[0]
    assert flat_t.shape[0] == total

    lane_cols, tile_rows, nsplit, steps, padded_rows = _plan_tiling(total)
    padded_total = padded_rows * lane_cols
    pad = padded_total - total
    if pad:
        # Pad with 1.0: contributes 0 to both L2 ((1-1)^2) and hinge (relu(1-1*1)).
        flat_p = jnp.concatenate([flat_p, jnp.ones((pad,), flat_p.dtype)])
        flat_t = jnp.concatenate([flat_t, jnp.ones((pad,), flat_t.dtype)])
    pred2d = flat_p.reshape(padded_rows, lane_cols)
    tgt2d = flat_t.reshape(padded_rows, lane_cols)
    a2d = a.reshape(1, -1)  # keep the vector lane-dense

    kernel = functools.partial(
        _loss_kernel,
        loss_type=loss_type,
        hidden_rtype=hidden_rtype,
        hidden_rweight=float(hidden_rweight),
        outer_rtype=outer_rtype,
        outer_rweight=float(outer_rweight),
        inv_n=1.0 / float(total),
    )

    def row_map(i, j):
        return (i * steps + j, 0)

    bytes_accessed = int(
        pred2d.size * pred2d.dtype.itemsize + tgt2d.size * tgt2d.dtype.itemsize
        + W.size * W.dtype.itemsize + a2d.size * a2d.dtype.itemsize
        + nsplit * _SUBLANE * _LANE * 4)
    cost = pl.CostEstimate(
        flops=int(4 * padded_total + 4 * W.size + 4 * a2d.size),
        transcendentals=2,
        bytes_accessed=bytes_accessed)

    out = pl.pallas_call(
        kernel,
        out_shape=jax.ShapeDtypeStruct((nsplit * _SUBLANE, _LANE), jnp.float32),
        grid=(nsplit, steps),
        in_specs=[
            pl.BlockSpec((tile_rows, lane_cols), row_map),
            pl.BlockSpec((tile_rows, lane_cols), row_map),
            pl.BlockSpec(W.shape, lambda i, j: (0, 0)),    # resident, DMA'd once
            pl.BlockSpec(a2d.shape, lambda i, j: (0, 0)),  # resident, DMA'd once
        ],
        out_specs=pl.BlockSpec((_SUBLANE, _LANE), lambda i, j: (i, 0)),
        scratch_shapes=[pltpu.VMEM((tile_rows, lane_cols), jnp.float32)],
        compiler_params=pltpu.CompilerParams(
            dimension_semantics=("parallel", "arbitrary"),
            vmem_limit_bytes=32 * 1024 * 1024),
        cost_estimate=cost,
    )(pred2d, tgt2d, W, a2d)

    # Combine the per-split partials (data-fit already divided by N in-kernel).
    return jnp.sum(out)


def _reference(predictions, target, W, a, *, loss_type, hidden_rtype,
               hidden_rweight, outer_rtype, outer_rweight):
    if loss_type == 'L2':
        error = jnp.mean(jnp.square(predictions - target))
    else:
        error = jnp.mean(jax.nn.relu(1 - predictions * target))
    hidden = 0.0 if hidden_rtype == 'none' else jnp.linalg.norm(W, ord=hidden_rtype)
    outer = 0.0 if outer_rtype == 'none' else jnp.linalg.norm(a.reshape(-1), ord=outer_rtype)
    return error + hidden_rweight * hidden + outer_rweight * outer


if __name__ == "__main__":
    key = jax.random.PRNGKey(0)
    k1, k2, k3, k4 = jax.random.split(key, 4)

    batch, out_dim = 8, 128          # predictions / target
    hidden_in, hidden_out = 32, 64   # W (hidden-layer weight matrix)
    predictions = jax.random.normal(k1, (batch, out_dim), dtype=jnp.float32)
    target = jax.random.normal(k2, (batch, out_dim), dtype=jnp.float32)
    W = jax.random.normal(k3, (hidden_in, hidden_out), dtype=jnp.float32) * 0.1
    a = jax.random.normal(k4, (hidden_out,), dtype=jnp.float32) * 0.1

    cfgs = [
        dict(loss_type='L2', hidden_rtype='fro', hidden_rweight=0.05,
             outer_rtype=2, outer_rweight=0.1),
        dict(loss_type='hinge', hidden_rtype='fro', hidden_rweight=0.05,
             outer_rtype=2, outer_rweight=0.1),
        dict(loss_type='L2', hidden_rtype=float('inf'), hidden_rweight=0.02,
             outer_rtype=1, outer_rweight=0.03),
    ]
    for cfg in cfgs:
        loss = loss_regularized(predictions, target, W, a, **cfg)
        jax.block_until_ready(loss)
        ref = _reference(predictions, target, W, a, **cfg)
        assert jnp.allclose(loss, ref, rtol=1e-5, atol=1e-5), (cfg, loss, ref)

    # Larger ragged case: exercises multi-step grid, the parallel split, and the
    # 1.0-padding of the flattened slab.
    k5, k6 = jax.random.split(k4)
    p2 = jax.random.normal(k5, (256, 1000), dtype=jnp.float32)
    t2 = jax.random.normal(k6, (256, 1000), dtype=jnp.float32)
    cfg = dict(loss_type='hinge', hidden_rtype=1, hidden_rweight=0.01,
               outer_rtype=float('inf'), outer_rweight=0.02)
    loss = loss_regularized(p2, t2, W, a, **cfg)
    jax.block_until_ready(loss)
    ref = _reference(p2, t2, W, a, **cfg)
    assert jnp.allclose(loss, ref, rtol=1e-5, atol=1e-5), (loss, ref)

    print("KERNEL_OK")
</pallas_src>

<mosaic_0001>
module attributes {stable_mosaic.version = 11 : i64} {
  func.func @_loss_kernel(%arg0: i32, %arg1: i32, %arg2: memref<8x128xf32, #tpu.memory_space<vmem>>, %arg3: memref<8x128xf32, #tpu.memory_space<vmem>>, %arg4: memref<32x64xf32, #tpu.memory_space<vmem>>, %arg5: memref<1x64xf32, #tpu.memory_space<vmem>>, %arg6: memref<8x128xf32, #tpu.memory_space<vmem>>, %arg7: memref<8x128xf32, #tpu.memory_space<vmem>>) attributes {dimension_semantics = [#tpu.dimension_semantics<parallel>, #tpu.dimension_semantics<arbitrary>], iteration_bounds = array<i64: 1, 1>, scalar_prefetch = 0 : i64, scratch_operands = 1 : i64, tpu.core_type = #tpu.core_type<tc>, window_params = [{transform_indices = @transform_0, window_bounds = array<i64: 8, 128>}, {transform_indices = @transform_1, window_bounds = array<i64: 8, 128>}, {pipeline_mode = #tpu.pipeline_mode<synchronous>, transform_indices = @transform_2, window_bounds = array<i64: 32, 64>}, {pipeline_mode = #tpu.pipeline_mode<synchronous>, transform_indices = @transform_3, window_bounds = array<i64: 1, 64>}, {transform_indices = @transform_4, window_bounds = array<i64: 8, 128>}]} {
    %c0_i32 = arith.constant 0 : i32
    %0 = arith.cmpi eq, %arg1, %c0_i32 : i32
    %1 = arith.extui %0 : i1 to i32
    %c0_i32_0 = arith.constant 0 : i32
    %2 = arith.cmpi ne, %1, %c0_i32_0 : i32
    scf.if %2 {
      %cst = arith.constant 0.000000e+00 : f32
      %13 = vector.broadcast %cst : f32 to vector<8x128xf32>
      %c0_10 = arith.constant 0 : index
      %c0_11 = arith.constant 0 : index
      %14 = vector.load %arg7[%c0_10, %c0_11] : memref<8x128xf32, #tpu.memory_space<vmem>>, vector<8x128xf32>
      tpu.vector_store %arg7[%c0_10, %c0_11], %13 {strides = array<i32>} : memref<8x128xf32, #tpu.memory_space<vmem>>, vector<8x128xf32>,
    } else {
    }
    %c0 = arith.constant 0 : index
    %c0_1 = arith.constant 0 : index
    %3 = vector.load %arg2[%c0, %c0_1] : memref<8x128xf32, #tpu.memory_space<vmem>>, vector<8x128xf32>
    %c0_2 = arith.constant 0 : index
    %c0_3 = arith.constant 0 : index
    %4 = vector.load %arg3[%c0_2, %c0_3] : memref<8x128xf32, #tpu.memory_space<vmem>>, vector<8x128xf32>
    %5 = arith.subf %3, %4 : vector<8x128xf32>
    %c0_4 = arith.constant 0 : index
    %c0_5 = arith.constant 0 : index
    %6 = vector.load %arg7[%c0_4, %c0_5] : memref<8x128xf32, #tpu.memory_space<vmem>>, vector<8x128xf32>
    %7 = arith.mulf %5, %5 : vector<8x128xf32>
    %8 = arith.addf %6, %7 : vector<8x128xf32>
    %c0_6 = arith.constant 0 : index
    %c0_7 = arith.constant 0 : index
    %9 = vector.load %arg7[%c0_6, %c0_7] : memref<8x128xf32, #tpu.memory_space<vmem>>, vector<8x128xf32>
    tpu.vector_store %arg7[%c0_6, %c0_7], %8 {strides = array<i32>} : memref<8x128xf32, #tpu.memory_space<vmem>>, vector<8x128xf32>,
    %c0_i32_8 = arith.constant 0 : i32
    %10 = arith.cmpi eq, %arg1, %c0_i32_8 : i32
    %11 = arith.extui %10 : i1 to i32
    %c0_i32_9 = arith.constant 0 : i32
    %12 = arith.cmpi ne, %11, %c0_i32_9 : i32
    scf.if %12 {
      %c0_10 = arith.constant 0 : index
      %c0_11 = arith.constant 0 : index
      %13 = vector.load %arg7[%c0_10, %c0_11] : memref<8x128xf32, #tpu.memory_space<vmem>>, vector<8x128xf32>
      %14 = vector.shape_cast %13 : vector<8x128xf32> to vector<1x8x128xf32>
      %cst = arith.constant dense<0.000000e+00> : vector<1xf32>
      %15 = vector.multi_reduction <add>, %14, %cst [1, 2] : vector<1x8x128xf32> to vector<1xf32>
      %16 = vector.shape_cast %15 : vector<1xf32> to vector<1x1x1xf32>
      %17 = vector.extract %16[0, 0, 0] : f32 from vector<1x1x1xf32>
      %c0_12 = arith.constant 0 : index
      %c0_13 = arith.constant 0 : index
      %18 = vector.load %arg4[%c0_12, %c0_13] : memref<32x64xf32, #tpu.memory_space<vmem>>, vector<32x64xf32>
      %19 = arith.mulf %18, %18 : vector<32x64xf32>
      %20 = vector.shape_cast %19 : vector<32x64xf32> to vector<1x32x64xf32>
      %cst_14 = arith.constant dense<0.000000e+00> : vector<1xf32>
      %21 = vector.multi_reduction <add>, %20, %cst_14 [1, 2] : vector<1x32x64xf32> to vector<1xf32>
      %22 = vector.shape_cast %21 : vector<1xf32> to vector<1x1x1xf32>
      %23 = vector.extract %22[0, 0, 0] : f32 from vector<1x1x1xf32>
      %24 = math.sqrt %23 : f32
      %c0_15 = arith.constant 0 : index
      %c0_16 = arith.constant 0 : index
      %25 = vector.load %arg5[%c0_15, %c0_16] : memref<1x64xf32, #tpu.memory_space<vmem>>, vector<1x64xf32>
      %26 = arith.mulf %25, %25 : vector<1x64xf32>
      %27 = vector.shape_cast %26 : vector<1x64xf32> to vector<1x1x64xf32>
      %cst_17 = arith.constant dense<0.000000e+00> : vector<1xf32>
      %28 = vector.multi_reduction <add>, %27, %cst_17 [1, 2] : vector<1x1x64xf32> to vector<1xf32>
      %29 = vector.shape_cast %28 : vector<1xf32> to vector<1x1x1xf32>
      %30 = vector.extract %29[0, 0, 0] : f32 from vector<1x1x1xf32>
      %31 = math.sqrt %30 : f32
      %cst_18 = arith.constant 5.000000e-02 : f32
      %32 = arith.mulf %cst_18, %24 : f32
      %cst_19 = arith.constant 1.000000e-01 : f32
      %33 = arith.mulf %cst_19, %31 : f32
      %34 = arith.addf %32, %33 : f32
      %c0_i32_20 = arith.constant 0 : i32
      %35 = arith.cmpi eq, %arg0, %c0_i32_20 : i32
      %cst_21 = arith.constant 0.000000e+00 : f32
      %36 = arith.select %35, %34, %cst_21 : f32
      %cst_22 = arith.constant 9.765625E-4 : f32
      %37 = arith.mulf %17, %cst_22 : f32
      %38 = arith.addf %37, %36 : f32
      %39 = tpu.iota {dimensions = array<i32: 0>} : vector<8x128xi32>
      %40 = tpu.iota {dimensions = array<i32: 1>} : vector<8x128xi32>
      %c0_i32_23 = arith.constant 0 : i32
      %41 = vector.broadcast %c0_i32_23 : i32 to vector<8x128xi32>
      %42 = arith.cmpi eq, %39, %41 : vector<8x128xi32>
      %c0_i32_24 = arith.constant 0 : i32
      %43 = vector.broadcast %c0_i32_24 : i32 to vector<8x128xi32>
      %44 = arith.cmpi eq, %40, %43 : vector<8x128xi32>
      %45 = arith.andi %42, %44 : vector<8x128xi1>
      %cst_25 = arith.constant 0.000000e+00 : f32
      %46 = vector.broadcast %38 : f32 to vector<8x128xf32>
      %47 = vector.broadcast %cst_25 : f32 to vector<8x128xf32>
      %48 = arith.select %45, %46, %47 : vector<8x128xi1>, vector<8x128xf32>
      %c0_26 = arith.constant 0 : index
      %c0_27 = arith.constant 0 : index
      %49 = vector.load %arg6[%c0_26, %c0_27] : memref<8x128xf32, #tpu.memory_space<vmem>>, vector<8x128xf32>
      tpu.vector_store %arg6[%c0_26, %c0_27], %48 {strides = array<i32>} : memref<8x128xf32, #tpu.memory_space<vmem>>, vector<8x128xf32>,
    } else {
    }
    return
  }
  func.func @transform_0(%arg0: i32, %arg1: i32) -> (i32, i32) {
    %c1_i32 = arith.constant 1 : i32
    %0 = arith.muli %arg0, %c1_i32 : i32
    %1 = arith.addi %0, %arg1 : i32
    %c0_i32 = arith.constant 0 : i32
    %c0_i32_0 = arith.constant 0 : i32
    return %1, %c0_i32 : i32, i32
  }
  func.func @transform_1(%arg0: i32, %arg1: i32) -> (i32, i32) {
    %c1_i32 = arith.constant 1 : i32
    %0 = arith.muli %arg0, %c1_i32 : i32
    %1 = arith.addi %0, %arg1 : i32
    %c0_i32 = arith.constant 0 : i32
    %c0_i32_0 = arith.constant 0 : i32
    return %1, %c0_i32 : i32, i32
  }
  func.func @transform_2(%arg0: i32, %arg1: i32) -> (i32, i32) {
    %c0_i32 = arith.constant 0 : i32
    %c0_i32_0 = arith.constant 0 : i32
    %c0_i32_1 = arith.constant 0 : i32
    return %c0_i32, %c0_i32_0 : i32, i32
  }
  func.func @transform_3(%arg0: i32, %arg1: i32) -> (i32, i32) {
    %c0_i32 = arith.constant 0 : i32
    %c0_i32_0 = arith.constant 0 : i32
    %c0_i32_1 = arith.constant 0 : i32
    return %c0_i32, %c0_i32_0 : i32, i32
  }
  func.func @transform_4(%arg0: i32, %arg1: i32) -> (i32, i32) {
    %c0_i32 = arith.constant 0 : i32
    %c0_i32_0 = arith.constant 0 : i32
    return %arg0, %c0_i32 : i32, i32
  }
}

</mosaic_0001>

<llo_original>
// kernel: tpu_custom_call.1
$region0: #{tpu_custom_call.1}
  #allocation0 [shape = 'u32[]', space=smem, size = 0x4, offset = 0x4, fixed_abs, tag = 'smem constant byte address 0x4 - core index']
  #allocation1 [shape = 'u32[144,128]{1,0:T(1,128)}', space=vmem, size = 0x12000, scoped, tag = 'internal scratch']
  #allocation2 [shape = 'f32[8,128]{1,0:T(8,128)}', space=vmem, size = 0x1000, scoped, tag = 'scratch operand']
  %s0 = inlined_call_operand.hbm [shape: f32[8,128], index: 0, kind: input, shape index: {}]
  %s1 = inlined_call_operand.hbm [shape: f32[8,128], index: 1, kind: input, shape index: {}]
  %s2 = inlined_call_operand.hbm [shape: f32[32,64], index: 2, kind: input, shape index: {}]
  %s3 = inlined_call_operand.vmem [shape: f32[1,64], index: 3, kind: input, shape index: {}]
  %s4 = inlined_call_operand.hbm [shape: f32[8,128], index: 4, kind: output, shape index: {}]
  %s5 = sld [smem:[#allocation0]]
  $region46: #{tpu_custom_call.1} parent=0
    _
  %s7 = ssub.s32 1, %s5
  %s8 = scalar_select 0, %s7, %s5
  $region1: #{tpu_custom_call.1} parent=0
    #allocation3 [shape = 'u8[4096]{0}', space=vmem, size = 0x1000, scoped, tag = 'input window, operand 0, single buffered']
    #allocation4 [shape = 's32[1]{0}', space=sflag, size = 0x4, scoped, tag = 'scoped memory for tpu_custom_call.1']
    #allocation5 [shape = 's32[1]{0}', space=sflag, size = 0x4, scoped, tag = 'scoped memory for tpu_custom_call.1']
    #allocation6 [shape = 'u8[4096]{0}', space=vmem, size = 0x1000, scoped, tag = 'input window, operand 1, single buffered']
    #allocation7 [shape = 's32[1]{0}', space=sflag, size = 0x4, scoped, tag = 'scoped memory for tpu_custom_call.1']
    #allocation8 [shape = 'u8[16384]{0}', space=vmem, size = 0x4000, scoped, tag = 'input window, operand 2, single buffered']
    #allocation9 [shape = 'u8[4096]{0}', space=vmem, size = 0x1000, scoped, tag = 'output window, operand 0, single buffered']
    %9 = vsyncpa [#allocation4], 0
    %10 = vsyncpa [#allocation7], 0
    %11 = vsyncpa [#allocation5], 0
    // Predicated region
    $region2: #{tpu_custom_call.1} parent=1 // pred_check
      _
    $region3: #{tpu_custom_call.1} parent=1 // pred_check_branch
      %13 = sbr.rel (0) target = $region5
    $region4: #{tpu_custom_call.1} parent=1 // pred_region
      %s14 = sadd.s32 0, 0
      %s16 = ssub.s32 128, 128
      %17 = vsyncadd [#allocation4], %s16
      %s18 = smul.addr %s14, 128
      %s19 = scalar_lea.hbm %s0, %s18
      %s21 = sshll.u32 [#allocation3], 4
      %s22 = int_to_ptr.vmem [resolvable:$true] %s21
      %24 = dma.hbm_to_vmem [thread:$0]  %s19, 128, %s22, [#allocation4]
    $region5: #{tpu_custom_call.1} parent=1 // pred_fallthru
      _
    // Predicated region
    $region6: #{tpu_custom_call.1} parent=1 // pred_check
      _
    $region7: #{tpu_custom_call.1} parent=1 // pred_check_branch
      %26 = sbr.rel (0) target = $region9
    $region8: #{tpu_custom_call.1} parent=1 // pred_region
      %s27 = sadd.s32 0, 0
      %s29 = ssub.s32 128, 128
      %30 = vsyncadd [#allocation7], %s29
      %s31 = smul.addr %s27, 128
      %s32 = scalar_lea.hbm %s1, %s31
      %s34 = sshll.u32 [#allocation6], 4
      %s35 = int_to_ptr.vmem [resolvable:$true] %s34
      %37 = dma.hbm_to_vmem [thread:$0]  %s32, 128, %s35, [#allocation7]
    $region9: #{tpu_custom_call.1} parent=1 // pred_fallthru
      _
    // Predicated region
    $region10: #{tpu_custom_call.1} parent=1 // pred_check
      _
    $region11: #{tpu_custom_call.1} parent=1 // pred_check_branch
      %39 = sbr.rel (0) target = $region13
    $region12: #{tpu_custom_call.1} parent=1 // pred_region
      %s41 = ssub.s32 512, 512
      %42 = vsyncadd [#allocation7], %s41
      %s43 = sshll.u32 [#allocation8], 4
      %s44 = int_to_ptr.vmem [resolvable:$true] %s43
      %49 = dma.hbm_to_vmem [thread:$0]  %s2, 512, %s44, [#allocation7], 128, 128, 8
    $region13: #{tpu_custom_call.1} parent=1 // pred_fallthru
      _
    // Predicated region
    $region14: #{tpu_custom_call.1} parent=1 // pred_check
      _
    $region15: #{tpu_custom_call.1} parent=1 // pred_check_branch
      %51 = sbr.rel (0) target = $region17
    $region16: #{tpu_custom_call.1} parent=1 // pred_region
      _
    $region17: #{tpu_custom_call.1} parent=1 // pred_fallthru
      _
    // Predicated region
    $region18: #{tpu_custom_call.1} parent=1 // pred_check
      _
    $region19: #{tpu_custom_call.1} parent=1 // pred_check_branch
      %53 = sbr.rel (0) target = $region21
    $region20: #{tpu_custom_call.1} parent=1 // pred_region
      %54 = dma.done [#allocation4], 128
    $region21: #{tpu_custom_call.1} parent=1 // pred_fallthru
      _
    // Predicated region
    $region22: #{tpu_custom_call.1} parent=1 // pred_check
      _
    $region23: #{tpu_custom_call.1} parent=1 // pred_check_branch
      %56 = sbr.rel (0) target = $region25
    $region24: #{tpu_custom_call.1} parent=1 // pred_region
      %57 = dma.done [#allocation7], 128
    $region25: #{tpu_custom_call.1} parent=1 // pred_fallthru
      _
    // Predicated region
    $region26: #{tpu_custom_call.1} parent=1 // pred_check
      _
    $region27: #{tpu_custom_call.1} parent=1 // pred_check_branch
      %59 = sbr.rel (0) target = $region29
    $region28: #{tpu_custom_call.1} parent=1 // pred_region
      %60 = dma.done [#allocation7], 512
    $region29: #{tpu_custom_call.1} parent=1 // pred_fallthru
      _
    %s61 = sadd.s32 0, 0
    %s62 = sadd.s32 0, 0
    %p63 = scmp.eq.s32.totalorder 0, 0
    // Predicated region
    $region30: #{tpu_custom_call.1} parent=1 // pred_check
      %p64 = pneg %p63
    $region31: #{tpu_custom_call.1} parent=1 // pred_check_branch
      %66 = sbr.rel (%p64) target = $region33
    $region32: #{tpu_custom_call.1} parent=1 // pred_region
      %67 = vst [vmem:[#allocation2] sm:$0xff] 0.0
    $region33: #{tpu_custom_call.1} parent=1 // pred_fallthru
      _
    %v68 = vld [vmem:[#allocation3] sm:$0xff]
    %v69 = vld [vmem:[#allocation6] sm:$0xff]
    %v70 = vsub.f32 %v68, %v69
    %v71 = vld [vmem:[#allocation2] sm:$0xff]
    %v72 = vmul.f32 %v70, %v70
    %v73 = vadd.f32 %v71, %v72
    %74 = vst [vmem:[#allocation2] sm:$0xff] %v73
    // Predicated region
    $region34: #{tpu_custom_call.1} parent=1 // pred_check
      %p75 = pneg %p63
    $region35: #{tpu_custom_call.1} parent=1 // pred_check_branch
      %77 = sbr.rel (%p75) target = $region37
    $region36: #{tpu_custom_call.1} parent=1 // pred_region
      %v78 = vld [vmem:[#allocation2] sm:$0xff]
      %79 = vadd.xlane.f32.xlu0 %v78
      %v80 = vpop.xlane.xlu0 %79
      %v81 = vrot.slane %v80, 4
      %v82 = vadd.f32 %v80, %v81
      %v83 = vrot.slane %v82, 2
      %v84 = vadd.f32 %v82, %v83
      %v85 = vrot.slane %v84, 1
      %v86 = vadd.f32 %v84, %v85
      %s87 = vtos %v86
      %v88 = vld [vmem:[#allocation8] sm:$0xff]
      %v89 = vld [vmem:[#allocation8 + $0x8] sm:$0xff]
      %v90 = vld [vmem:[#allocation8 + $0x10] sm:$0xff]
      %v91 = vld [vmem:[#allocation8 + $0x18] sm:$0xff]
      %v92 = vmul.f32 %v88, %v88
      %v93 = vmul.f32 %v89, %v89
      %v94 = vmul.f32 %v90, %v90
      %v95 = vmul.f32 %v91, %v91
      %vm96 = vcmask 523264
      %v97 = vsel %vm96, %v92, 0.0
      %v98 = vsel %vm96, %v93, 0.0
      %v99 = vadd.f32 %v97, %v98
      %v100 = vsel %vm96, %v94, 0.0
      %v101 = vadd.f32 %v99, %v100
      %v102 = vsel %vm96, %v95, 0.0
      %v103 = vadd.f32 %v101, %v102
      %104 = vadd.xlane.f32.xlu0 %v103
      %v105 = vpop.xlane.xlu0 %104
      %v106 = vrot.slane %v105, 4
      %v107 = vadd.f32 %v105, %v106
      %v108 = vrot.slane %v107, 2
      %v109 = vadd.f32 %v107, %v108
      %v110 = vrot.slane %v109, 1
      %v111 = vadd.f32 %v109, %v110
      %s112 = vtos %v111
      %v113 = vstv %s112
      %v114 = vrsqrt.pop %v113
      %v115 = vmul.f32 %v113, %v114
      %vm116 = vcmp.eq.f32.partialorder %v113, inf
      %v117 = vsel %vm116, %v113, %v115
      %vm118 = vcmp.eq.f32.partialorder %v113, 0.0
      %v119 = vand.u32 %v113, 2147483648
      %v120 = vsel %vm118, %v119, %v117
      %s121 = vtos %v120
      %v122 = vld [vmem:[%s3] sm:$0x1]
      %v123 = vmul.f32 %v122, %v122
      %vm124 = vcmask 516096
      %v125 = vsel %vm124, %v123, 0.0
      %126 = vadd.xlane.f32.xlu0 %v125
      %v127 = vpop.xlane.xlu0 %126
      %v128 = vrot.slane %v127, 4
      %v129 = vadd.f32 %v127, %v128
      %v130 = vrot.slane %v129, 2
      %v131 = vadd.f32 %v129, %v130
      %v132 = vrot.slane %v131, 1
      %v133 = vadd.f32 %v131, %v132
      %s134 = vtos %v133
      %v135 = vstv %s134
      %v136 = vrsqrt.pop %v135
      %v137 = vmul.f32 %v135, %v136
      %vm138 = vcmp.eq.f32.partialorder %v135, inf
      %v139 = vsel %vm138, %v135, %v137
      %vm140 = vcmp.eq.f32.partialorder %v135, 0.0
      %v141 = vand.u32 %v135, 2147483648
      %v142 = vsel %vm140, %v141, %v139
      %s143 = vtos %v142
      %s144 = smul.f32 %s121, 0.05
      %s145 = smul.f32 %s143, 0.1
      %s146 = sadd.f32 %s144, %s145
      %p147 = scmp.eq.s32.totalorder 0, 0
      %s148 = scalar_select %p147, %s146, 0.0
      %s149 = smul.f32 %s87, 0.0009765625
      %s150 = sadd.f32 %s149, %s148
      %v151 = vlaneseq
      %v152 = vshrl.u32 %v151, 7
      %v153 = vlaneseq
      %v154 = vand.u32 %v153, 127
      %vm155 = vcmp.eq.s32.totalorder %v152, 0
      %vm156 = vcmp.eq.s32.totalorder %v154, 0
      %vm157 = vmand %vm155, %vm156
      %v158 = vstv %s150
      %v159 = vsel %vm157, %v158, 0.0
      %160 = vst [vmem:[#allocation9] sm:$0xff] %v159
    $region37: #{tpu_custom_call.1} parent=1 // pred_fallthru
      _
    // Predicated region
    $region38: #{tpu_custom_call.1} parent=1 // pred_check
      _
    $region39: #{tpu_custom_call.1} parent=1 // pred_check_branch
      %162 = sbr.rel (0) target = $region41
    $region40: #{tpu_custom_call.1} parent=1 // pred_region
      %s164 = ssub.s32 128, 128
      %165 = vsyncadd [#allocation5], %s164
      %s167 = sshll.u32 [#allocation9], 4
      %s168 = int_to_ptr.vmem [resolvable:$true] %s167
      %170 = dma.vmem_to_hbm [thread:$0]  %s168, 128, %s4, [#allocation5]
    $region41: #{tpu_custom_call.1} parent=1 // pred_fallthru
      _
    // Predicated region
    $region42: #{tpu_custom_call.1} parent=1 // pred_check
      _
    $region43: #{tpu_custom_call.1} parent=1 // pred_check_branch
      %172 = sbr.rel (0) target = $region45
    $region44: #{tpu_custom_call.1} parent=1 // pred_region
      %173 = dma.done [#allocation5], 128
    $region45: #{tpu_custom_call.1} parent=1 // pred_fallthru
      _
    %174 = vsyncpa [#allocation4], 1
    %175 = vsyncpa [#allocation7], 1
    %176 = vsyncpa [#allocation5], 1

</llo_original>
